<compile_context>
chip_gen: v7x
topology: tpu7x:2x2x1
jax: 0.10.0
libtpu: 0.0.40
codegen_flags: <defaults>
</compile_context>

<pallas_src>
import math

import jax
import jax.numpy as jnp
from jax.experimental import pallas as pl
from jax.experimental.pallas import tpu as pltpu


def _cdiv(a, b):
    return -(-a // b)


def _round_up(x, m):
    return ((x + m - 1) // m) * m


def _layer_scaler_kernel(x_ref, g_ref, o_ref):
    x = x_ref[...]                       # (block_rows, L) tile
    g = g_ref[...]                       # (g_rows, L) resident scale
    gr = g.shape[0]
    if gr == x.shape[0] or gr == 1:
        o_ref[...] = (x * g).astype(o_ref.dtype)
    else:
        # g is a full sublane-packed (sublane, L) slab and block_rows is a
        # multiple of sublane: broadcast over whole row-groups instead of a
        # per-multiply sublane splat.  Pure leading-dim reshape (tile-aligned).
        o_ref[...] = (
            x.reshape(x.shape[0] // gr, gr, x.shape[1]) * g[None]
        ).reshape(x.shape).astype(o_ref.dtype)


def _scale_2d(x2d, gamma_1xL, *, target_block_bytes):
    """Per-lane scale over a lane-dense (rows, L) view (L % 128 == 0)."""
    rows, L = x2d.shape
    dtype = x2d.dtype
    itemsize = jnp.dtype(dtype).itemsize
    sublane = max(8, 32 // itemsize)          # f32: 8, bf16: 16, int8/fp8: 32
    bytes_per_row = L * itemsize

    # Block sizing: big blocks amortize per-step overhead; an even, balanced
    # block count keeps both v7x TensorCores busy ("parallel" grid axis).
    if rows <= sublane:
        block_rows = rows                     # single block == full array dim
    else:
        target_rows = max(sublane, target_block_bytes // bytes_per_row)
        nb = max(1, _cdiv(rows, target_rows))
        if nb > 1:
            nb = _round_up(nb, 2)             # even split across 2 TCs (v7x)
        block_rows = _round_up(_cdiv(rows, nb), sublane)
        nb = _cdiv(rows, block_rows)
        # Avoid an odd block count with a near-empty tail block.
        if nb > 1 and nb % 2 == 1 and block_rows > sublane:
            cand = block_rows - sublane
            if _cdiv(rows, cand) % 2 == 0:
                block_rows = cand
    num_blocks = int(_cdiv(rows, block_rows))

    # Full sublane-packed gamma operand when the block is sublane-aligned.
    g_rows = sublane if (block_rows % sublane == 0) else 1
    gamma_op = jnp.tile(gamma_1xL, (g_rows, 1))

    # VMEM need: double-buffered in + out tiles, resident gamma, slack.
    block_bytes = block_rows * bytes_per_row
    vmem_limit = 4 * block_bytes + 2 * g_rows * bytes_per_row + (2 << 20)
    vmem_limit = int(min(max(vmem_limit, 16 << 20), 56 << 20))

    return pl.pallas_call(
        _layer_scaler_kernel,
        out_shape=jax.ShapeDtypeStruct((rows, L), dtype),
        grid_spec=pltpu.PrefetchScalarGridSpec(
            num_scalar_prefetch=0,
            grid=(num_blocks,),
            in_specs=[
                pl.BlockSpec((block_rows, L), lambda i: (i, 0)),   # x tile
                pl.BlockSpec((g_rows, L), lambda i: (0, 0)),       # gamma
            ],
            out_specs=pl.BlockSpec((block_rows, L), lambda i: (i, 0)),
        ),
        compiler_params=pltpu.CompilerParams(
            dimension_semantics=("parallel",),
            vmem_limit_bytes=vmem_limit,
        ),
    )(x2d, gamma_op)


def layer_scaler(x, gamma, *, target_block_bytes=6 << 20):
    """Computes gamma[None, ...] * x (per-feature scale along the last axis)."""
    dim = int(gamma.shape[-1])
    assert x.shape[-1] == dim, "last dim of x must equal gamma's dim"
    orig_shape = x.shape
    dtype = x.dtype
    total = int(math.prod(orig_shape))
    if total == 0:
        return x

    # Cast the parameter to the activation dtype (no implicit promotion in-kernel).
    gamma = gamma.reshape(dim).astype(dtype)

    # Element at flat index f has feature f % dim, so reshaping the contiguous
    # stream to (rows, L) with L % dim == 0 keeps lane l -> gamma[l % dim].
    # L = lcm(dim, 128) guarantees a >=128-wide, 128-multiple lane axis.
    L = (dim * 128) // math.gcd(dim, 128)
    gamma_row = jnp.tile(gamma, L // dim).reshape(1, L)

    if total % L == 0:
        out2d = _scale_2d(x.reshape(total // L, L), gamma_row,
                          target_block_bytes=target_block_bytes)
        return out2d.reshape(orig_shape)

    # Ragged total (rare): full-width kernel on the bulk, tiny XLA multiply on
    # the (< L element) tail; never drop the kernel's lane width below 128.
    # (The concat is one extra pass over the bulk output; only on this path.)
    xflat = x.reshape(total)
    bulk = (total // L) * L
    parts = []
    if bulk:
        parts.append(
            _scale_2d(xflat[:bulk].reshape(bulk // L, L), gamma_row,
                      target_block_bytes=target_block_bytes).reshape(bulk))
    tail = (xflat[bulk:].reshape(-1, dim) * gamma[None, :]).reshape(total - bulk)
    parts.append(tail)
    out = parts[0] if len(parts) == 1 else jnp.concatenate(parts)
    return out.reshape(orig_shape)


if __name__ == "__main__":
    key = jax.random.PRNGKey(0)
    kx, kg = jax.random.split(key, 2)

    batch, seq, dim = 2, 8, 32        # x: (batch, seq, hidden)
    init_scale = 1e-2                 # LayerScaler(dim, init_scale)

    x = jax.random.normal(kx, (batch, seq, dim), dtype=jnp.float32)
    # A "trained-like" gamma (fresh init would be init_scale * ones(dim));
    # random values exercise the per-feature broadcast.
    gamma = init_scale * jax.random.normal(kg, (dim,), dtype=jnp.float32)

    out = jax.block_until_ready(layer_scaler(x, gamma))

    # Reference: exactly the module's forward.
    ref = gamma[None, ...] * x
    assert out.shape == x.shape
    assert jnp.allclose(out, ref, atol=1e-6, rtol=1e-6), "mismatch vs reference"

    print("KERNEL_OK")
</pallas_src>

<mosaic_0001>
module attributes {stable_mosaic.version = 11 : i64} {
  func.func @_layer_scaler_kernel(%arg0: i32, %arg1: memref<4x128xf32, #tpu.memory_space<vmem>>, %arg2: memref<1x128xf32, #tpu.memory_space<vmem>>, %arg3: memref<4x128xf32, #tpu.memory_space<vmem>>) attributes {dimension_semantics = [#tpu.dimension_semantics<parallel>], iteration_bounds = array<i64: 1>, scalar_prefetch = 0 : i64, scratch_operands = 0 : i64, tpu.core_type = #tpu.core_type<tc>, window_params = [{transform_indices = @transform_0, window_bounds = array<i64: 4, 128>}, {pipeline_mode = #tpu.pipeline_mode<synchronous>, transform_indices = @transform_1, window_bounds = array<i64: 1, 128>}, {transform_indices = @transform_2, window_bounds = array<i64: 4, 128>}]} {
    %c0 = arith.constant 0 : index
    %c0_0 = arith.constant 0 : index
    %0 = vector.load %arg1[%c0, %c0_0] : memref<4x128xf32, #tpu.memory_space<vmem>>, vector<4x128xf32>
    %c0_1 = arith.constant 0 : index
    %c0_2 = arith.constant 0 : index
    %1 = vector.load %arg2[%c0_1, %c0_2] : memref<1x128xf32, #tpu.memory_space<vmem>>, vector<1x128xf32>
    %2 = vector.broadcast %1 : vector<1x128xf32> to vector<4x128xf32>
    %3 = arith.mulf %0, %2 : vector<4x128xf32>
    %c0_3 = arith.constant 0 : index
    %c0_4 = arith.constant 0 : index
    %4 = vector.load %arg3[%c0_3, %c0_4] : memref<4x128xf32, #tpu.memory_space<vmem>>, vector<4x128xf32>
    tpu.vector_store %arg3[%c0_3, %c0_4], %3 {strides = array<i32>} : memref<4x128xf32, #tpu.memory_space<vmem>>, vector<4x128xf32>,
    return
  }
  func.func @transform_0(%arg0: i32) -> (i32, i32) {
    %c0_i32 = arith.constant 0 : i32
    %c0_i32_0 = arith.constant 0 : i32
    return %arg0, %c0_i32 : i32, i32
  }
  func.func @transform_1(%arg0: i32) -> (i32, i32) {
    %c0_i32 = arith.constant 0 : i32
    %c0_i32_0 = arith.constant 0 : i32
    %c0_i32_1 = arith.constant 0 : i32
    return %c0_i32, %c0_i32_0 : i32, i32
  }
  func.func @transform_2(%arg0: i32) -> (i32, i32) {
    %c0_i32 = arith.constant 0 : i32
    %c0_i32_0 = arith.constant 0 : i32
    return %arg0, %c0_i32 : i32, i32
  }
}

</mosaic_0001>

<llo_original>
// kernel: tpu_custom_call.1
$region0: #{tpu_custom_call.1}
  #allocation0 [shape = 'u32[]', space=smem, size = 0x4, offset = 0x4, fixed_abs, tag = 'smem constant byte address 0x4 - core index']
  #allocation1 [shape = 'u32[144,128]{1,0:T(1,128)}', space=vmem, size = 0x12000, scoped, tag = 'internal scratch']
  %s0 = inlined_call_operand.hbm [shape: f32[4,128], index: 0, kind: input, shape index: {}]
  %s1 = inlined_call_operand.vmem [shape: f32[1,128], index: 1, kind: input, shape index: {}]
  %s2 = inlined_call_operand.hbm [shape: f32[4,128], index: 2, kind: output, shape index: {}]
  %s3 = sld [smem:[#allocation0]]
  $region22: #{tpu_custom_call.1} parent=0
    _
  %s5 = ssub.s32 1, %s3
  %s6 = scalar_select 0, %s5, %s3
  $region1: #{tpu_custom_call.1} parent=0
    #allocation2 [shape = 'u8[2048]{0}', space=vmem, size = 0x800, scoped, tag = 'input window, operand 0, single buffered']
    #allocation3 [shape = 's32[1]{0}', space=sflag, size = 0x4, scoped, tag = 'scoped memory for tpu_custom_call.1']
    #allocation4 [shape = 's32[1]{0}', space=sflag, size = 0x4, scoped, tag = 'scoped memory for tpu_custom_call.1']
    #allocation5 [shape = 'u8[2048]{0}', space=vmem, size = 0x800, scoped, tag = 'output window, operand 0, single buffered']
    %7 = vsyncpa [#allocation3], 0
    %8 = vsyncpa [#allocation4], 0
    // Predicated region
    $region2: #{tpu_custom_call.1} parent=1 // pred_check
      _
    $region3: #{tpu_custom_call.1} parent=1 // pred_check_branch
      %10 = sbr.rel (0) target = $region5
    $region4: #{tpu_custom_call.1} parent=1 // pred_region
      %s12 = ssub.s32 64, 64
      %13 = vsyncadd [#allocation3], %s12
      %s15 = sshll.u32 [#allocation2], 4
      %s16 = int_to_ptr.vmem [resolvable:$true] %s15
      %18 = dma.hbm_to_vmem [thread:$0]  %s0, 64, %s16, [#allocation3]
    $region5: #{tpu_custom_call.1} parent=1 // pred_fallthru
      _
    // Predicated region
    $region6: #{tpu_custom_call.1} parent=1 // pred_check
      _
    $region7: #{tpu_custom_call.1} parent=1 // pred_check_branch
      %20 = sbr.rel (0) target = $region9
    $region8: #{tpu_custom_call.1} parent=1 // pred_region
      _
    $region9: #{tpu_custom_call.1} parent=1 // pred_fallthru
      _
    // Predicated region
    $region10: #{tpu_custom_call.1} parent=1 // pred_check
      _
    $region11: #{tpu_custom_call.1} parent=1 // pred_check_branch
      %22 = sbr.rel (0) target = $region13
    $region12: #{tpu_custom_call.1} parent=1 // pred_region
      %23 = dma.done [#allocation3], 64
    $region13: #{tpu_custom_call.1} parent=1 // pred_fallthru
      _
    %v24 = vld [vmem:[#allocation2] sm:$0xf]
    %v25 = vld [vmem:[%s1] sm:$0x1]
    %v27 = vlaneseq
    %v28 = vshrl.u32 %v27, 7
    %v29 = vsub.s32 0, %v28
    %v30 = vrot.slane %v25, %v29
    %v32 = vmul.f32 %v24, %v30
    %33 = vst [vmem:[#allocation5] sm:$0xf] %v32
    // Predicated region
    $region14: #{tpu_custom_call.1} parent=1 // pred_check
      _
    $region15: #{tpu_custom_call.1} parent=1 // pred_check_branch
      %35 = sbr.rel (0) target = $region17
    $region16: #{tpu_custom_call.1} parent=1 // pred_region
      %s37 = ssub.s32 64, 64
      %38 = vsyncadd [#allocation4], %s37
      %s40 = sshll.u32 [#allocation5], 4
      %s41 = int_to_ptr.vmem [resolvable:$true] %s40
      %43 = dma.vmem_to_hbm [thread:$0]  %s41, 64, %s2, [#allocation4]
    $region17: #{tpu_custom_call.1} parent=1 // pred_fallthru
      _
    // Predicated region
    $region18: #{tpu_custom_call.1} parent=1 // pred_check
      _
    $region19: #{tpu_custom_call.1} parent=1 // pred_check_branch
      %45 = sbr.rel (0) target = $region21
    $region20: #{tpu_custom_call.1} parent=1 // pred_region
      %46 = dma.done [#allocation4], 64
    $region21: #{tpu_custom_call.1} parent=1 // pred_fallthru
      _
    %47 = vsyncpa [#allocation3], 1
    %48 = vsyncpa [#allocation4], 1

</llo_original>
